<compile_context>
chip_gen: v7x
topology: tpu7x:2x2x1
jax: 0.10.0
libtpu: 0.0.40
codegen_flags: <defaults>
</compile_context>

<pallas_src>
import functools
import math

import jax
import jax.numpy as jnp
from jax import lax
from jax.experimental import pallas as pl
from jax.experimental.pallas import tpu as pltpu

_VMEM_LIMIT = 48 * 1024 * 1024        # above the 16-32 MiB scoped default, below
                                      # physical VMEM on v5e/v6e and v7x (per core)
_REL_BLOCK_BUDGET = 4 * 1024 * 1024   # target bytes for the per-step rel_pos block


# ----------------------------- tiled linear projection ----------------------------- #
def _linear_kernel(x_ref, w_ref, b_ref, o_ref):
    # y = x @ W^T + b.  w keeps the torch [out, in] layout; contracting dim 1 of both
    # operands lets the MXU consume it directly (no wrapper-side w.T / extra HBM copy).
    y = lax.dot_general(x_ref[...], w_ref[...], (((1,), (1,)), ((), ())),
                        preferred_element_type=jnp.float32)
    o_ref[...] = (y + b_ref[...]).astype(o_ref.dtype)


def linear(x, w, b, *, tm=512):
    """x: [N, F_in]; w: [F_out, F_in] (torch nn.Linear layout); b: [F_out]."""
    n, f_in = x.shape
    f_out = w.shape[0]
    tm = n if n <= tm else tm              # full N (always legal) or an 8-aligned tile
    return pl.pallas_call(
        _linear_kernel,
        out_shape=jax.ShapeDtypeStruct((n, f_out), x.dtype),
        grid=(pl.cdiv(n, tm),),
        in_specs=[
            pl.BlockSpec((tm, f_in), lambda r: (r, 0)),
            pl.BlockSpec((f_out, f_in), lambda r: (0, 0)),
            pl.BlockSpec((1, f_out), lambda r: (0, 0)),
        ],
        out_specs=pl.BlockSpec((tm, f_out), lambda r: (r, 0)),
        compiler_params=pltpu.CompilerParams(
            dimension_semantics=("parallel",),
            vmem_limit_bytes=_VMEM_LIMIT),
    )(x, w, b.reshape(1, f_out))


# ------------------------------- attention core kernel ------------------------------ #
def _attn_kernel(q_ref, k_ref, v_ref, rel_ref, wr_ref, br_ref, u_ref, vp_ref,
                 rand_ref, mask_ref, o_ref, qvw_ref, *, num_heads, head_dim):
    H, D = num_heads, head_dim
    q = q_ref[...]          # [Ti, hidden]    W_q-projected queries (this i-tile)
    k = k_ref[...]          # [L, hidden]     keys (NOT projected, as in the PyTorch module)
    val = v_ref[...]        # [L, hidden]     W_v-projected values
    rel = rel_ref[...]      # [Ti, L, hidden] raw (unprojected) rel_pos_embedding
    wr = wr_ref[...]        # [hidden, hidden] W_r, torch [out, in] layout
    br = br_ref[...]        # [1, hidden]      W_r bias
    u = u_ref[...]          # [H, D]
    vp = vp_ref[...]        # [H, D]
    rand = rand_ref[...]    # [H, Ti, L]
    mask = mask_ref[...]    # [1, L] int32, 1 = valid key position

    # --- fused W_r projection (algebraic refactor; see module docstring) ---
    csts = []
    for h in range(H):
        sl = slice(h * D, (h + 1) * D)
        qv_h = q[:, sl] + vp[h:h + 1, :]                                   # [Ti, D]
        qvw_ref[:, h, :] = jnp.dot(qv_h, wr[sl, :],
                                   preferred_element_type=jnp.float32)    # [Ti, hidden]
        csts.append(jnp.sum(qv_h * br[:, sl], axis=-1, keepdims=True))    # [Ti, 1]

    # B_D for all heads in one batched MXU contraction over the hidden axis:
    #   b_d[i, h, j] = sum_f qvw[i, h, f] * rel_pos[i, j, f]
    b_d = jnp.einsum('ihf,ijf->ihj', qvw_ref[...], rel,
                     preferred_element_type=jnp.float32)                  # [Ti, H, L]

    neg = jnp.float32(-1e15)
    outs = []
    for h in range(H):
        sl = slice(h * D, (h + 1) * D)
        qu_h = q[:, sl] + u[h:h + 1, :]                                    # [Ti, D]
        # A_C = (q + u) @ k^T
        a_c = lax.dot_general(qu_h, k[:, sl], (((1,), (1,)), ((), ())),
                              preferred_element_type=jnp.float32)          # [Ti, L]
        score = a_c + b_d[:, h, :] + csts[h] + rand[h]
        score = jnp.where(mask > 0, score, neg)
        m = jnp.max(score, axis=-1, keepdims=True)
        e = jnp.exp(score - m)
        denom = jnp.sum(e, axis=-1, keepdims=True)
        inv = pl.reciprocal(denom, approx=True)        # EUP; divide -> multiply
        inv = inv * (2.0 - denom * inv)                # one Newton step -> ~f32 exact
        p = e * inv
        # TODO(synk): attention dropout (nn.Dropout) treated as identity (inference / p=0).
        outs.append(jnp.dot(p, val[:, sl], preferred_element_type=jnp.float32))

    # single lane-dense [Ti, hidden] store (last dim = full hidden width)
    o_ref[...] = jnp.concatenate(outs, axis=-1).astype(o_ref.dtype)


# ------------------------------------ wrapper --------------------------------------- #
def adapt_self_attention(params, query, key, value, seq_len, lex_num,
                         rel_pos_embedding, num_heads):
    B, L, hidden = query.shape
    H = num_heads
    D = hidden // H

    # Projections (row-tiled Pallas matmuls).  `key` is NOT projected (matches the
    # PyTorch module) and the W_r projection is fused into the attention kernel.
    q = linear(query.reshape(B * L, hidden),
               params["w_q_w"], params["w_q_b"]).reshape(B, L, hidden)
    v = linear(value.reshape(B * L, hidden),
               params["w_v_w"], params["w_v_b"]).reshape(B, L, hidden)

    # TODO(synk): like the PyTorch module, assumes L <= randomAttention's stored size.
    rand = params["randomAttention"][0, :, :L, :L]                       # [H, L, L]

    total = seq_len + lex_num                                            # [B]
    mask = (jnp.arange(L)[None, :] < total[:, None]).astype(jnp.int32)
    mask = mask.reshape(B, 1, L)

    # i-tile size: full L if the whole [L, L, hidden] rel block fits the budget,
    # otherwise the largest multiple of 8 keeping [Ti, L, hidden] under budget.
    if L * L * hidden * 4 <= _REL_BLOCK_BUDGET or L <= 8:
        ti = L
    else:
        ti = max(8, min(L, (_REL_BLOCK_BUDGET // (L * hidden * 4)) // 8 * 8))
    n_it = pl.cdiv(L, ti)

    kernel = functools.partial(_attn_kernel, num_heads=H, head_dim=D)
    out = pl.pallas_call(
        kernel,
        out_shape=jax.ShapeDtypeStruct((B, L, hidden), jnp.float32),
        # b outer / i-tiles inner: key/value/mask/W_r/b_r/u/v blocks keep the same
        # block index across the inner loop and are not re-DMA'd.
        grid=(B, n_it),
        in_specs=[
            pl.BlockSpec((None, ti, hidden), lambda b, i: (b, i, 0)),        # q (projected)
            pl.BlockSpec((None, L, hidden), lambda b, i: (b, 0, 0)),         # key (raw)
            pl.BlockSpec((None, L, hidden), lambda b, i: (b, 0, 0)),         # value (projected)
            pl.BlockSpec((None, ti, L, hidden), lambda b, i: (b, i, 0, 0)),  # rel_pos (raw)
            pl.BlockSpec((hidden, hidden), lambda b, i: (0, 0)),             # W_r
            pl.BlockSpec((1, hidden), lambda b, i: (0, 0)),                  # b_r
            pl.BlockSpec((H, D), lambda b, i: (0, 0)),                       # u
            pl.BlockSpec((H, D), lambda b, i: (0, 0)),                       # v (param)
            pl.BlockSpec((H, ti, L), lambda b, i: (0, i, 0)),                # randomAttention
            pl.BlockSpec((None, 1, L), lambda b, i: (b, 0, 0)),              # key mask
        ],
        out_specs=pl.BlockSpec((None, ti, hidden), lambda b, i: (b, i, 0)),
        scratch_shapes=[pltpu.VMEM((ti, H, hidden), jnp.float32)],           # fused (q+v)@W_r_h
        compiler_params=pltpu.CompilerParams(
            dimension_semantics=("parallel", "parallel"),
            vmem_limit_bytes=_VMEM_LIMIT),
    )(q, key, v, rel_pos_embedding, params["w_r_w"],
      params["w_r_b"].reshape(1, hidden), params["u"], params["v"], rand, mask)

    return out


# -------------------------------- pure-JAX reference -------------------------------- #
def reference(params, query, key, value, seq_len, lex_num, rel_pos, num_heads):
    B, L, hidden = query.shape
    H = num_heads
    D = hidden // H
    q = query @ params["w_q_w"].T + params["w_q_b"]
    v = value @ params["w_v_w"].T + params["w_v_b"]
    rel = rel_pos @ params["w_r_w"].T + params["w_r_b"]
    qh = q.reshape(B, L, H, D).transpose(0, 2, 1, 3)
    kh = key.reshape(B, L, H, D).transpose(0, 2, 1, 3)
    vh = v.reshape(B, L, H, D).transpose(0, 2, 1, 3)
    relh = rel.reshape(B, L, L, H, D).transpose(0, 3, 1, 2, 4)
    u = params["u"]
    vp = params["v"]
    a_c = jnp.einsum('bhid,bhjd->bhij', qh + u[None, :, None, :], kh)
    b_d = jnp.einsum('bhid,bhijd->bhij', qh + vp[None, :, None, :], relh)
    score = a_c + b_d + params["randomAttention"][:, :, :L, :L]
    total = seq_len + lex_num
    mask = (jnp.arange(L)[None, :] < total[:, None])[:, None, None, :]
    score = jnp.where(mask, score, -1e15)
    p = jax.nn.softmax(score, axis=-1)
    out = jnp.einsum('bhij,bhjd->bhid', p, vh)
    return out.transpose(0, 2, 1, 3).reshape(B, L, hidden)


if __name__ == "__main__":
    B, L, hidden, H = 2, 8, 32, 4
    RAND_N = 320  # dataset='weibo' -> randomAttention is [1, H, 320, 320]

    key0 = jax.random.PRNGKey(0)
    ks = jax.random.split(key0, 13)
    params = {
        "w_q_w": 0.1 * jax.random.normal(ks[0], (hidden, hidden), jnp.float32),
        "w_q_b": 0.01 * jax.random.normal(ks[1], (hidden,), jnp.float32),
        "w_v_w": 0.1 * jax.random.normal(ks[2], (hidden, hidden), jnp.float32),
        "w_v_b": 0.01 * jax.random.normal(ks[3], (hidden,), jnp.float32),
        "w_r_w": 0.1 * jax.random.normal(ks[4], (hidden, hidden), jnp.float32),
        "w_r_b": 0.01 * jax.random.normal(ks[5], (hidden,), jnp.float32),
        "u": 0.1 * jax.random.normal(ks[6], (H, hidden // H), jnp.float32),
        "v": 0.1 * jax.random.normal(ks[7], (H, hidden // H), jnp.float32),
        # kaiming_normal_(a=sqrt(5)) ~ gain/sqrt(fan) * N(0,1)
        "randomAttention": (math.sqrt(2.0 / (1.0 + 5.0)) / math.sqrt(RAND_N))
        * jax.random.normal(ks[8], (1, H, RAND_N, RAND_N), jnp.float32),
    }

    query = jax.random.normal(ks[9], (B, L, hidden), jnp.float32)
    key_in = jax.random.normal(ks[10], (B, L, hidden), jnp.float32)
    value = jax.random.normal(ks[11], (B, L, hidden), jnp.float32)
    rel_pos = jax.random.normal(ks[12], (B, L, L, hidden), jnp.float32)
    seq_len = jnp.array([5, 6], jnp.int32)
    lex_num = jnp.array([2, 2], jnp.int32)

    out = adapt_self_attention(params, query, key_in, value, seq_len, lex_num,
                               rel_pos, H)
    out = jax.block_until_ready(out)

    ref = reference(params, query, key_in, value, seq_len, lex_num, rel_pos, H)
    max_err = float(jnp.max(jnp.abs(out - ref)))
    assert out.shape == (B, L, hidden)
    assert jnp.allclose(out, ref, rtol=2e-3, atol=2e-3), max_err
    print("KERNEL_OK")
</pallas_src>

<mosaic_0001>
module attributes {stable_mosaic.version = 11 : i64} {
  func.func @_linear_kernel(%arg0: i32, %arg1: memref<16x32xf32, #tpu.memory_space<vmem>>, %arg2: memref<32x32xf32, #tpu.memory_space<vmem>>, %arg3: memref<1x32xf32, #tpu.memory_space<vmem>>, %arg4: memref<16x32xf32, #tpu.memory_space<vmem>>) attributes {dimension_semantics = [#tpu.dimension_semantics<parallel>], iteration_bounds = array<i64: 1>, scalar_prefetch = 0 : i64, scratch_operands = 0 : i64, tpu.core_type = #tpu.core_type<tc>, window_params = [{transform_indices = @transform_0, window_bounds = array<i64: 16, 32>}, {pipeline_mode = #tpu.pipeline_mode<synchronous>, transform_indices = @transform_1, window_bounds = array<i64: 32, 32>}, {pipeline_mode = #tpu.pipeline_mode<synchronous>, transform_indices = @transform_2, window_bounds = array<i64: 1, 32>}, {transform_indices = @transform_3, window_bounds = array<i64: 16, 32>}]} {
    %c0 = arith.constant 0 : index
    %c0_0 = arith.constant 0 : index
    %0 = vector.load %arg1[%c0, %c0_0] : memref<16x32xf32, #tpu.memory_space<vmem>>, vector<16x32xf32>
    %c0_1 = arith.constant 0 : index
    %c0_2 = arith.constant 0 : index
    %1 = vector.load %arg2[%c0_1, %c0_2] : memref<32x32xf32, #tpu.memory_space<vmem>>, vector<32x32xf32>
    %cst = arith.constant dense<0.000000e+00> : vector<16x32xf32>
    %2 = tpu.matmul %0, %1, %cst {dimension_numbers = #tpu.dot_dimension_numbers<[1], [1], [0], [0], [0, 0, 1, 0], [], []>} : vector<16x32xf32>, vector<32x32xf32>, vector<16x32xf32> -> vector<16x32xf32>
    %c0_3 = arith.constant 0 : index
    %c0_4 = arith.constant 0 : index
    %3 = vector.load %arg3[%c0_3, %c0_4] : memref<1x32xf32, #tpu.memory_space<vmem>>, vector<1x32xf32>
    %4 = vector.broadcast %3 : vector<1x32xf32> to vector<16x32xf32>
    %5 = arith.addf %2, %4 : vector<16x32xf32>
    %c0_5 = arith.constant 0 : index
    %c0_6 = arith.constant 0 : index
    %6 = vector.load %arg4[%c0_5, %c0_6] : memref<16x32xf32, #tpu.memory_space<vmem>>, vector<16x32xf32>
    tpu.vector_store %arg4[%c0_5, %c0_6], %5 {strides = array<i32>} : memref<16x32xf32, #tpu.memory_space<vmem>>, vector<16x32xf32>,
    return
  }
  func.func @transform_0(%arg0: i32) -> (i32, i32) {
    %c0_i32 = arith.constant 0 : i32
    %c0_i32_0 = arith.constant 0 : i32
    return %arg0, %c0_i32 : i32, i32
  }
  func.func @transform_1(%arg0: i32) -> (i32, i32) {
    %c0_i32 = arith.constant 0 : i32
    %c0_i32_0 = arith.constant 0 : i32
    %c0_i32_1 = arith.constant 0 : i32
    return %c0_i32, %c0_i32_0 : i32, i32
  }
  func.func @transform_2(%arg0: i32) -> (i32, i32) {
    %c0_i32 = arith.constant 0 : i32
    %c0_i32_0 = arith.constant 0 : i32
    %c0_i32_1 = arith.constant 0 : i32
    return %c0_i32, %c0_i32_0 : i32, i32
  }
  func.func @transform_3(%arg0: i32) -> (i32, i32) {
    %c0_i32 = arith.constant 0 : i32
    %c0_i32_0 = arith.constant 0 : i32
    return %arg0, %c0_i32 : i32, i32
  }
}

</mosaic_0001>

<llo_original>
// kernel: tpu_custom_call.1
$region0: #{tpu_custom_call.1}
  #allocation0 [shape = 'u32[]', space=smem, size = 0x4, offset = 0x4, fixed_abs, tag = 'smem constant byte address 0x4 - core index']
  #allocation1 [shape = 'u32[144,128]{1,0:T(1,128)}', space=vmem, size = 0x12000, scoped, tag = 'internal scratch']
  %s0 = inlined_call_operand.hbm [shape: f32[16,32], index: 0, kind: input, shape index: {}]
  %s1 = inlined_call_operand.hbm [shape: f32[32,32], index: 1, kind: input, shape index: {}]
  %s2 = inlined_call_operand.vmem [shape: f32[1,32], index: 2, kind: input, shape index: {}]
  %s3 = inlined_call_operand.hbm [shape: f32[16,32], index: 3, kind: output, shape index: {}]
  %s4 = sld [smem:[#allocation0]]
  $region30: #{tpu_custom_call.1} parent=0
    _
  %s6 = ssub.s32 1, %s4
  %s7 = scalar_select 0, %s6, %s4
  $region1: #{tpu_custom_call.1} parent=0
    #allocation2 [shape = 'u8[8192]{0}', space=vmem, size = 0x2000, scoped, tag = 'input window, operand 0, single buffered']
    #allocation3 [shape = 's32[1]{0}', space=sflag, size = 0x4, scoped, tag = 'scoped memory for tpu_custom_call.1']
    #allocation4 [shape = 's32[1]{0}', space=sflag, size = 0x4, scoped, tag = 'scoped memory for tpu_custom_call.1']
    #allocation5 [shape = 'u8[16384]{0}', space=vmem, size = 0x4000, scoped, tag = 'input window, operand 1, single buffered']
    #allocation6 [shape = 's32[1]{0}', space=sflag, size = 0x4, scoped, tag = 'scoped memory for tpu_custom_call.1']
    #allocation7 [shape = 'u8[8192]{0}', space=vmem, size = 0x2000, scoped, tag = 'output window, operand 0, single buffered']
    %8 = vsyncpa [#allocation3], 0
    %9 = vsyncpa [#allocation6], 0
    %10 = vsyncpa [#allocation4], 0
    // Predicated region
    $region2: #{tpu_custom_call.1} parent=1 // pred_check
      _
    $region3: #{tpu_custom_call.1} parent=1 // pred_check_branch
      %12 = sbr.rel (0) target = $region5
    $region4: #{tpu_custom_call.1} parent=1 // pred_region
      %s14 = ssub.s32 256, 256
      %15 = vsyncadd [#allocation3], %s14
      %s16 = sshll.u32 [#allocation2], 4
      %s17 = int_to_ptr.vmem [resolvable:$true] %s16
      %22 = dma.hbm_to_vmem [thread:$0]  %s0, 256, %s17, [#allocation3], 128, 128, 8
    $region5: #{tpu_custom_call.1} parent=1 // pred_fallthru
      _
    // Predicated region
    $region6: #{tpu_custom_call.1} parent=1 // pred_check
      _
    $region7: #{tpu_custom_call.1} parent=1 // pred_check_branch
      %24 = sbr.rel (0) target = $region9
    $region8: #{tpu_custom_call.1} parent=1 // pred_region
      %s26 = ssub.s32 512, 512
      %27 = vsyncadd [#allocation6], %s26
      %s28 = sshll.u32 [#allocation5], 4
      %s29 = int_to_ptr.vmem [resolvable:$true] %s28
      %34 = dma.hbm_to_vmem [thread:$0]  %s1, 512, %s29, [#allocation6], 128, 128, 8
    $region9: #{tpu_custom_call.1} parent=1 // pred_fallthru
      _
    // Predicated region
    $region10: #{tpu_custom_call.1} parent=1 // pred_check
      _
    $region11: #{tpu_custom_call.1} parent=1 // pred_check_branch
      %36 = sbr.rel (0) target = $region13
    $region12: #{tpu_custom_call.1} parent=1 // pred_region
      _
    $region13: #{tpu_custom_call.1} parent=1 // pred_fallthru
      _
    // Predicated region
    $region14: #{tpu_custom_call.1} parent=1 // pred_check
      _
    $region15: #{tpu_custom_call.1} parent=1 // pred_check_branch
      %38 = sbr.rel (0) target = $region17
    $region16: #{tpu_custom_call.1} parent=1 // pred_region
      %39 = dma.done [#allocation3], 256
    $region17: #{tpu_custom_call.1} parent=1 // pred_fallthru
      _
    // Predicated region
    $region18: #{tpu_custom_call.1} parent=1 // pred_check
      _
    $region19: #{tpu_custom_call.1} parent=1 // pred_check_branch
      %41 = sbr.rel (0) target = $region21
    $region20: #{tpu_custom_call.1} parent=1 // pred_region
      %42 = dma.done [#allocation6], 512
    $region21: #{tpu_custom_call.1} parent=1 // pred_fallthru
      _
    %v43 = vld [vmem:[#allocation2] sm:$0xff]
    %v44 = vld [vmem:[#allocation2 + $0x8] sm:$0xff]
    %v45 = vld [vmem:[#allocation5] sm:$0xff]
    %v46 = vld [vmem:[#allocation5 + $0x8] sm:$0xff]
    %v47 = vld [vmem:[#allocation5 + $0x10] sm:$0xff]
    %v48 = vld [vmem:[#allocation5 + $0x18] sm:$0xff]
    %v49 = vld [vmem:[%s2] sm:$0x1]
    %v51 = vlaneseq
    %v52 = vshrl.u32 %v51, 7
    %v53 = vsub.s32 0, %v52
    %v54 = vrot.slane %v49, %v53
    %vm56 = vcmask 261120
    %v58 = vsel %vm56, %v43, 0
    %v61 = vsel %vm56, %v44, 0
    %v64 = vsel %vm56, %v45, 0
    %v67 = vsel %vm56, %v46, 0
    %v70 = vsel %vm56, %v47, 0
    %v73 = vsel %vm56, %v48, 0
    %75 = vmatprep.subr.mxu0 0.0
    %76 = vmatpush1.xpose.msra.mxu0 %v64
    %77 = vmatprep.subr.mxu0 0.0
    %78 = vmatpush1.xpose.msra.mxu0 %v67
    %79 = vmatprep.subr.mxu0 0.0
    %80 = vmatpush1.xpose.msra.mxu0 %v70
    %81 = vmatprep.subr.mxu0 0.0
    %82 = vmatpush1.xpose.msra.mxu0 %v73
    %83 = vmatprep.subr.mxu0 0.0
    %84 = vmatpush1.xpose.msra.mxu0 0.0
    %85 = vmatprep.subr.mxu0 0.0
    %86 = vmatpush1.xpose.msra.mxu0 0.0
    %87 = vmatprep.subr.mxu0 0.0
    %88 = vmatpush1.xpose.msra.mxu0 0.0
    %89 = vmatprep.subr.mxu0 0.0
    %90 = vmatpush1.xpose.msra.mxu0 0.0
    %91 = vmatprep.subr.mxu0 0.0
    %92 = vmatpush1.xpose.msra.mxu0 0.0
    %93 = vmatprep.subr.mxu0 0.0
    %94 = vmatpush1.xpose.msra.mxu0 0.0
    %95 = vmatprep.subr.mxu0 0.0
    %96 = vmatpush1.xpose.msra.mxu0 0.0
    %97 = vmatprep.subr.mxu0 0.0
    %98 = vmatpush1.xpose.msra.mxu0 0.0
    %99 = vmatprep.subr.mxu0 0.0
    %100 = vmatpush1.xpose.msra.mxu0 0.0
    %101 = vmatprep.subr.mxu0 0.0
    %102 = vmatpush1.xpose.msra.mxu0 0.0
    %103 = vmatprep.subr.mxu0 0.0
    %104 = vmatpush1.xpose.msra.mxu0 0.0
    %105 = vmatprep.subr.mxu0 0.0
    %106 = vmatpush1.xpose.msra.mxu0 0.0
    %107 = vmatprep.subr.mxu0 0.0
    %108 = vmatpush1.xpose.msra.mxu0 0.0
    %109 = vmatprep.subr.mxu0 0.0
    %110 = vmatpush1.xpose.msra.mxu0 0.0
    %111 = vmatprep.subr.mxu0 0.0
    %112 = vmatpush1.xpose.msra.mxu0 0.0
    %113 = vmatprep.subr.mxu0 0.0
    %114 = vmatpush1.xpose.msra.mxu0 0.0
    %115 = vmatprep.subr.mxu0 0.0
    %116 = vmatpush1.xpose.msra.mxu0 0.0
    %117 = vmatprep.subr.mxu0 0.0
    %118 = vmatpush1.xpose.msra.mxu0 0.0
    %119 = vmatprep.subr.mxu0 0.0
    %120 = vmatpush1.xpose.msra.mxu0 0.0
    %121 = vmatprep.subr.mxu0 0.0
    %122 = vmatpush1.xpose.msra.mxu0 0.0
    %123 = vmatprep.subr.mxu0 0.0
    %124 = vmatpush1.xpose.msra.mxu0 0.0
    %125 = vmatprep.subr.mxu0 0.0
    %126 = vmatpush1.xpose.msra.mxu0 0.0
    %127 = vmatprep.subr.mxu0 0.0
    %128 = vmatpush1.xpose.msra.mxu0 0.0
    %129 = vmatprep.subr.mxu0 0.0
    %130 = vmatpush1.xpose.msra.mxu0 0.0
    %131 = vmatprep.subr.mxu0 0.0
    %132 = vmatpush1.xpose.msra.mxu0 0.0
    %133 = vmatprep.subr.mxu0 0.0
    %134 = vmatpush1.xpose.msra.mxu0 0.0
    %135 = vmatprep.subr.mxu0 0.0
    %136 = vmatpush1.xpose.msra.mxu0 0.0
    %137 = vmatprep.subr.mxu0 0.0
    %138 = vmatpush1.xpose.msra.mxu0 0.0
    %139 = vmatprep.mubr.f32.mxu0 0.0
    %140 = vmatmul.mubr.f32.gmra.mrb[0].mxu0 %v58
    %v141 = vpop.f32.mrb[0].mxu0
    %v142 = vadd.f32 %v54, %v141
    %v143 = vpop.f32.mrb[0].mxu0
    %144 = vmatprep.mubr.f32.mxu0 0.0
    %145 = vmatmul.mubr.f32.gmra.mrb[0].mxu0 %v61
    %v146 = vpop.f32.mrb[0].mxu0
    %v147 = vadd.f32 %v54, %v146
    %v148 = vpop.f32.mrb[0].mxu0
    %149 = vdwg.mxu0
    %150 = vst.msk [vmem:[#allocation7] sm:$0xff] %vm56, %v142
    %151 = vst.msk [vmem:[#allocation7 + $0x8] sm:$0xff] %vm56, %v147
    // Predicated region
    $region22: #{tpu_custom_call.1} parent=1 // pred_check
      _
    $region23: #{tpu_custom_call.1} parent=1 // pred_check_branch
      %153 = sbr.rel (0) target = $region25
    $region24: #{tpu_custom_call.1} parent=1 // pred_region
      %s155 = ssub.s32 256, 256
      %156 = vsyncadd [#allocation4], %s155
      %s157 = sshll.u32 [#allocation7], 4
      %s158 = int_to_ptr.vmem [resolvable:$true] %s157
      %163 = dma.vmem_to_hbm [thread:$0]  %s158, 256, %s3, [#allocation4], 128, 128, 8
    $region25: #{tpu_custom_call.1} parent=1 // pred_fallthru
      _
    // Predicated region
    $region26: #{tpu_custom_call.1} parent=1 // pred_check
      _
    $region27: #{tpu_custom_call.1} parent=1 // pred_check_branch
      %165 = sbr.rel (0) target = $region29
    $region28: #{tpu_custom_call.1} parent=1 // pred_region
      %166 = dma.done [#allocation4], 256
    $region29: #{tpu_custom_call.1} parent=1 // pred_fallthru
      _
    %167 = vsyncpa [#allocation3], 1
    %168 = vsyncpa [#allocation6], 1
    %169 = vsyncpa [#allocation4], 1

</llo_original>
